<compile_context>
chip_gen: v7x
topology: tpu7x:2x2x1
jax: 0.10.0
libtpu: 0.0.40
codegen_flags: <defaults>
</compile_context>

<pallas_src>
import math
import functools

import jax
import jax.numpy as jnp
from jax import lax
from jax.experimental import pallas as pl
from jax.experimental.pallas import tpu as pltpu


# ----------------------------------------------------------------------------
# Fused kernel: QKV projection + per-head attention for one batch element.
# ----------------------------------------------------------------------------
def _mha_fused_kernel(x_ref, w_ref, b_ref, out_ref, attn_ref, *,
                      heads, d_q, d_k, d_v, scale):
    x = x_ref[0]                                                    # [S, D]

    # Single fused QKV projection: one MXU contraction instead of three.
    # TODO(synk): for large B*S / d_model, tile this as an (M//tm, N//tn,
    # K//tk) matmul grid with an f32 VMEM accumulator and bf16 operands on
    # v6e/v7x; at these toy sizes a single full-block dot is optimal.
    qkv = jnp.dot(x, w_ref[...],
                  preferred_element_type=jnp.float32) + b_ref[...]  # [S, Nq+Nk+Nv]

    nq = heads * d_q
    nk = heads * d_k
    v_packed = qkv[:, nq + nk:]                                     # [S, H*d_v]

    # Module output: the reference SelfAttention returns V, so the MHA output
    # is just the V projection in the packed (lane-dense) [S, H*d_v] layout.
    out_ref[0] = v_packed

    # Attention product, computed exactly as the reference SelfAttention does
    # (even though the reference then discards it).  All heads are handled
    # inside this single grid step; per-head tiles are static lane slices of
    # the packed QKV block.
    # TODO(synk): for large S, switch to a flash-style online softmax over a
    # tiled KV axis so the [S, S] score tile never materializes (v7x: 64 MiB
    # VMEM budget).
    attn_heads = []
    for h in range(heads):
        q_h = qkv[:, h * d_q:(h + 1) * d_q]                         # [S, d_q]
        k_h = qkv[:, nq + h * d_k: nq + (h + 1) * d_k]              # [S, d_k]
        v_h = v_packed[:, h * d_v:(h + 1) * d_v]                    # [S, d_v]

        # Contract the last dims of Q and K directly (no explicit transpose).
        s = lax.dot_general(q_h, k_h, (((1,), (1,)), ((), ())),
                            preferred_element_type=jnp.float32) * scale
        m = jnp.max(s, axis=-1, keepdims=True)
        p = jnp.exp(s - m)
        # Approximate reciprocal lowers to the (otherwise idle) EUP slot.
        p = p * pl.reciprocal(jnp.sum(p, axis=-1, keepdims=True), approx=True)
        attn_heads.append(jnp.dot(p, v_h, preferred_element_type=jnp.float32))

    # Lane-dense store in the packed [S, H*d_v] layout (same layout PyTorch's
    # _transpose_output would produce).
    attn_ref[0] = jnp.concatenate(attn_heads, axis=-1)


def mha_forward(x, w_qkv, b_qkv, *, heads, d_q, d_k, d_v):
    """Returns (module_output, attention_product), both [B, S, heads*d_v]."""
    B, S, D = x.shape
    N = w_qkv.shape[1]
    assert N == heads * (d_q + d_k + d_v)
    scale = 1.0 / math.sqrt(d_k)

    kernel = functools.partial(_mha_fused_kernel, heads=heads,
                               d_q=d_q, d_k=d_k, d_v=d_v, scale=scale)

    out_shape = (
        jax.ShapeDtypeStruct((B, S, heads * d_v), jnp.float32),  # module output
        jax.ShapeDtypeStruct((B, S, heads * d_v), jnp.float32),  # attention
    )

    grid_spec = pltpu.PrefetchScalarGridSpec(
        num_scalar_prefetch=0,
        grid=(B,),
        in_specs=[
            pl.BlockSpec((1, S, D), lambda b: (b, 0, 0)),
            # Weight/bias index_maps are constant across the grid, so Pallas
            # fetches the block once and keeps it resident (for large d_model
            # consider pipeline_mode=pl.Buffered(1) to drop the second buffer).
            pl.BlockSpec((D, N), lambda b: (0, 0)),
            pl.BlockSpec((1, N), lambda b: (0, 0)),
        ],
        out_specs=(
            pl.BlockSpec((1, S, heads * d_v), lambda b: (b, 0, 0)),
            pl.BlockSpec((1, S, heads * d_v), lambda b: (b, 0, 0)),
        ),
    )

    return pl.pallas_call(
        kernel,
        out_shape=out_shape,
        grid_spec=grid_spec,
        # Batch axis is parallel -> shards across v7x's 2 TensorCores (B=2).
        compiler_params=pltpu.CompilerParams(
            dimension_semantics=("parallel",)),
    )(x, w_qkv, b_qkv)


# ----------------------------------------------------------------------------
# Module wrapper
# ----------------------------------------------------------------------------
class MultiHeadAttentionPallas:
    def __init__(self, d_model, heads, d_q, d_k, d_v, key):
        self.d_model = d_model
        self.heads = heads
        self.d_q, self.d_k, self.d_v = d_q, d_k, d_v
        ks = jax.random.split(key, 6)
        bound = 1.0 / math.sqrt(d_model)     # torch Linear default init bound

        def w(k, n):
            return jax.random.uniform(k, (d_model, n), jnp.float32, -bound, bound)

        def b(k, n):
            return jax.random.uniform(k, (1, n), jnp.float32, -bound, bound)

        self.wq, self.bq = w(ks[0], heads * d_q), b(ks[1], heads * d_q)
        self.wk, self.bk = w(ks[2], heads * d_k), b(ks[3], heads * d_k)
        self.wv, self.bv = w(ks[4], heads * d_v), b(ks[5], heads * d_v)

        # Concatenated QKV weight/bias for the fused single-matmul projection.
        self.w_qkv = jnp.concatenate([self.wq, self.wk, self.wv], axis=1)
        self.b_qkv = jnp.concatenate([self.bq, self.bk, self.bv], axis=1)

        self.last_attention = None

    def __call__(self, X):
        # TODO(synk): optional `mask` is a no-op in the reference and the
        # cross-attention `Y` path is not exercised here.
        out, attn = mha_forward(X, self.w_qkv, self.b_qkv,
                                heads=self.heads, d_q=self.d_q,
                                d_k=self.d_k, d_v=self.d_v)
        # Module returns only `out` (== V projection), matching PyTorch.
        self.last_attention = attn
        return out


if __name__ == "__main__":
    B, S, D = 2, 8, 32
    heads, d_q, d_k, d_v = 4, 8, 8, 8

    key = jax.random.PRNGKey(0)
    k_param, k_x = jax.random.split(key)
    mha = MultiHeadAttentionPallas(D, heads, d_q, d_k, d_v, k_param)

    X = jax.random.normal(k_x, (B, S, D), dtype=jnp.float32)

    out = mha(X)
    out = jax.block_until_ready(out)
    attn = jax.block_until_ready(mha.last_attention)

    # --- correctness check against plain-JAX reference ---
    V_ref = X @ mha.wv + mha.bv
    out_ref = V_ref  # module returns V (reshape round-trip is identity)

    Q_ref = X @ mha.wq + mha.bq
    K_ref = X @ mha.wk + mha.bk
    Qh = Q_ref.reshape(B, S, heads, d_q).transpose(0, 2, 1, 3)
    Kh = K_ref.reshape(B, S, heads, d_k).transpose(0, 2, 1, 3)
    Vh = V_ref.reshape(B, S, heads, d_v).transpose(0, 2, 1, 3)
    scores = jax.nn.softmax(
        jnp.einsum("bhqd,bhkd->bhqk", Qh, Kh) / math.sqrt(d_k), axis=-1)
    attn_ref = jnp.einsum("bhqk,bhkd->bhqd", scores, Vh)
    attn_ref = attn_ref.transpose(0, 2, 1, 3).reshape(B, S, heads * d_v)

    assert out.shape == (B, S, heads * d_v)
    assert jnp.allclose(out, out_ref, atol=1e-4, rtol=1e-4)
    # looser tolerance: approximate EUP reciprocal in the softmax normalizer
    assert jnp.allclose(attn, attn_ref, atol=2e-3, rtol=2e-3)

    print("KERNEL_OK")
</pallas_src>

<mosaic_0001>
module attributes {stable_mosaic.version = 11 : i64} {
  func.func @_mha_fused_kernel(%arg0: i32, %arg1: memref<1x8x32xf32, #tpu.memory_space<vmem>>, %arg2: memref<32x96xf32, #tpu.memory_space<vmem>>, %arg3: memref<1x96xf32, #tpu.memory_space<vmem>>, %arg4: memref<1x8x32xf32, #tpu.memory_space<vmem>>, %arg5: memref<1x8x32xf32, #tpu.memory_space<vmem>>) attributes {dimension_semantics = [#tpu.dimension_semantics<parallel>], iteration_bounds = array<i64: 2>, scalar_prefetch = 0 : i64, scratch_operands = 0 : i64, tpu.core_type = #tpu.core_type<tc>, window_params = [{transform_indices = @transform_0, window_bounds = array<i64: 1, 8, 32>}, {pipeline_mode = #tpu.pipeline_mode<synchronous>, transform_indices = @transform_1, window_bounds = array<i64: 32, 96>}, {pipeline_mode = #tpu.pipeline_mode<synchronous>, transform_indices = @transform_2, window_bounds = array<i64: 1, 96>}, {transform_indices = @transform_3, window_bounds = array<i64: 1, 8, 32>}, {transform_indices = @transform_4, window_bounds = array<i64: 1, 8, 32>}]} {
    %c0 = arith.constant 0 : index
    %c0_0 = arith.constant 0 : index
    %c0_1 = arith.constant 0 : index
    %0 = vector.load %arg1[%c0, %c0_0, %c0_1] : memref<1x8x32xf32, #tpu.memory_space<vmem>>, vector<1x8x32xf32>
    %1 = vector.shape_cast %0 : vector<1x8x32xf32> to vector<8x32xf32>
    %c0_2 = arith.constant 0 : index
    %c0_3 = arith.constant 0 : index
    %2 = vector.load %arg2[%c0_2, %c0_3] : memref<32x96xf32, #tpu.memory_space<vmem>>, vector<32x96xf32>
    %cst = arith.constant dense<0.000000e+00> : vector<8x96xf32>
    %3 = tpu.matmul %1, %2, %cst {dimension_numbers = #tpu.dot_dimension_numbers<[1], [0], [0], [1], [0, 0, 1, 1], [], []>} : vector<8x32xf32>, vector<32x96xf32>, vector<8x96xf32> -> vector<8x96xf32>
    %c0_4 = arith.constant 0 : index
    %c0_5 = arith.constant 0 : index
    %4 = vector.load %arg3[%c0_4, %c0_5] : memref<1x96xf32, #tpu.memory_space<vmem>>, vector<1x96xf32>
    %5 = vector.broadcast %4 : vector<1x96xf32> to vector<8x96xf32>
    %6 = arith.addf %3, %5 : vector<8x96xf32>
    %7 = vector.extract_strided_slice %6 {offsets = [0, 64], sizes = [8, 32], strides = [1, 1]} : vector<8x96xf32> to vector<8x32xf32>
    %c0_6 = arith.constant 0 : index
    %c0_7 = arith.constant 0 : index
    %c0_8 = arith.constant 0 : index
    %8 = vector.load %arg4[%c0_6, %c0_7, %c0_8] : memref<1x8x32xf32, #tpu.memory_space<vmem>>, vector<1x8x32xf32>
    %9 = vector.shape_cast %8 : vector<1x8x32xf32> to vector<8x32xf32>
    %10 = vector.shape_cast %7 : vector<8x32xf32> to vector<1x8x32xf32>
    tpu.vector_store %arg4[%c0_6, %c0_7, %c0_8], %10 {strides = array<i32>} : memref<1x8x32xf32, #tpu.memory_space<vmem>>, vector<1x8x32xf32>,
    %11 = vector.extract_strided_slice %6 {offsets = [0, 0], sizes = [8, 8], strides = [1, 1]} : vector<8x96xf32> to vector<8x8xf32>
    %12 = vector.extract_strided_slice %6 {offsets = [0, 32], sizes = [8, 8], strides = [1, 1]} : vector<8x96xf32> to vector<8x8xf32>
    %13 = vector.extract_strided_slice %7 {offsets = [0, 0], sizes = [8, 8], strides = [1, 1]} : vector<8x32xf32> to vector<8x8xf32>
    %cst_9 = arith.constant dense<0.000000e+00> : vector<8x8xf32>
    %14 = tpu.matmul %11, %12, %cst_9 {dimension_numbers = #tpu.dot_dimension_numbers<[1], [1], [0], [0], [0, 0, 1, 0], [], []>} : vector<8x8xf32>, vector<8x8xf32>, vector<8x8xf32> -> vector<8x8xf32>
    %cst_10 = arith.constant 0.353553385 : f32
    %15 = vector.broadcast %cst_10 : f32 to vector<8x8xf32>
    %16 = arith.mulf %14, %15 : vector<8x8xf32>
    %cst_11 = arith.constant dense<0xFF800000> : vector<8xf32>
    %17 = vector.multi_reduction <maximumf>, %16, %cst_11 [1] : vector<8x8xf32> to vector<8xf32>
    %18 = vector.shape_cast %17 : vector<8xf32> to vector<8x1xf32>
    %19 = vector.broadcast %18 : vector<8x1xf32> to vector<8x8xf32>
    %20 = arith.subf %16, %19 : vector<8x8xf32>
    %21 = math.exp %20 : vector<8x8xf32>
    %cst_12 = arith.constant dense<0.000000e+00> : vector<8xf32>
    %22 = vector.multi_reduction <add>, %21, %cst_12 [1] : vector<8x8xf32> to vector<8xf32>
    %23 = vector.shape_cast %22 : vector<8xf32> to vector<8x1xf32>
    %24 = tpu.reciprocal %23 {approx = true} : vector<8x1xf32> -> vector<8x1xf32>
    %25 = vector.broadcast %24 : vector<8x1xf32> to vector<8x8xf32>
    %26 = arith.mulf %21, %25 : vector<8x8xf32>
    %cst_13 = arith.constant dense<0.000000e+00> : vector<8x8xf32>
    %27 = tpu.matmul %26, %13, %cst_13 {dimension_numbers = #tpu.dot_dimension_numbers<[1], [0], [0], [1], [0, 0, 1, 1], [], []>} : vector<8x8xf32>, vector<8x8xf32>, vector<8x8xf32> -> vector<8x8xf32>
    %28 = vector.extract_strided_slice %6 {offsets = [0, 8], sizes = [8, 8], strides = [1, 1]} : vector<8x96xf32> to vector<8x8xf32>
    %29 = vector.extract_strided_slice %6 {offsets = [0, 40], sizes = [8, 8], strides = [1, 1]} : vector<8x96xf32> to vector<8x8xf32>
    %30 = vector.extract_strided_slice %7 {offsets = [0, 8], sizes = [8, 8], strides = [1, 1]} : vector<8x32xf32> to vector<8x8xf32>
    %cst_14 = arith.constant dense<0.000000e+00> : vector<8x8xf32>
    %31 = tpu.matmul %28, %29, %cst_14 {dimension_numbers = #tpu.dot_dimension_numbers<[1], [1], [0], [0], [0, 0, 1, 0], [], []>} : vector<8x8xf32>, vector<8x8xf32>, vector<8x8xf32> -> vector<8x8xf32>
    %cst_15 = arith.constant 0.353553385 : f32
    %32 = vector.broadcast %cst_15 : f32 to vector<8x8xf32>
    %33 = arith.mulf %31, %32 : vector<8x8xf32>
    %cst_16 = arith.constant dense<0xFF800000> : vector<8xf32>
    %34 = vector.multi_reduction <maximumf>, %33, %cst_16 [1] : vector<8x8xf32> to vector<8xf32>
    %35 = vector.shape_cast %34 : vector<8xf32> to vector<8x1xf32>
    %36 = vector.broadcast %35 : vector<8x1xf32> to vector<8x8xf32>
    %37 = arith.subf %33, %36 : vector<8x8xf32>
    %38 = math.exp %37 : vector<8x8xf32>
    %cst_17 = arith.constant dense<0.000000e+00> : vector<8xf32>
    %39 = vector.multi_reduction <add>, %38, %cst_17 [1] : vector<8x8xf32> to vector<8xf32>
    %40 = vector.shape_cast %39 : vector<8xf32> to vector<8x1xf32>
    %41 = tpu.reciprocal %40 {approx = true} : vector<8x1xf32> -> vector<8x1xf32>
    %42 = vector.broadcast %41 : vector<8x1xf32> to vector<8x8xf32>
    %43 = arith.mulf %38, %42 : vector<8x8xf32>
    %cst_18 = arith.constant dense<0.000000e+00> : vector<8x8xf32>
    %44 = tpu.matmul %43, %30, %cst_18 {dimension_numbers = #tpu.dot_dimension_numbers<[1], [0], [0], [1], [0, 0, 1, 1], [], []>} : vector<8x8xf32>, vector<8x8xf32>, vector<8x8xf32> -> vector<8x8xf32>
    %45 = vector.extract_strided_slice %6 {offsets = [0, 16], sizes = [8, 8], strides = [1, 1]} : vector<8x96xf32> to vector<8x8xf32>
    %46 = vector.extract_strided_slice %6 {offsets = [0, 48], sizes = [8, 8], strides = [1, 1]} : vector<8x96xf32> to vector<8x8xf32>
    %47 = vector.extract_strided_slice %7 {offsets = [0, 16], sizes = [8, 8], strides = [1, 1]} : vector<8x32xf32> to vector<8x8xf32>
    %cst_19 = arith.constant dense<0.000000e+00> : vector<8x8xf32>
    %48 = tpu.matmul %45, %46, %cst_19 {dimension_numbers = #tpu.dot_dimension_numbers<[1], [1], [0], [0], [0, 0, 1, 0], [], []>} : vector<8x8xf32>, vector<8x8xf32>, vector<8x8xf32> -> vector<8x8xf32>
    %cst_20 = arith.constant 0.353553385 : f32
    %49 = vector.broadcast %cst_20 : f32 to vector<8x8xf32>
    %50 = arith.mulf %48, %49 : vector<8x8xf32>
    %cst_21 = arith.constant dense<0xFF800000> : vector<8xf32>
    %51 = vector.multi_reduction <maximumf>, %50, %cst_21 [1] : vector<8x8xf32> to vector<8xf32>
    %52 = vector.shape_cast %51 : vector<8xf32> to vector<8x1xf32>
    %53 = vector.broadcast %52 : vector<8x1xf32> to vector<8x8xf32>
    %54 = arith.subf %50, %53 : vector<8x8xf32>
    %55 = math.exp %54 : vector<8x8xf32>
    %cst_22 = arith.constant dense<0.000000e+00> : vector<8xf32>
    %56 = vector.multi_reduction <add>, %55, %cst_22 [1] : vector<8x8xf32> to vector<8xf32>
    %57 = vector.shape_cast %56 : vector<8xf32> to vector<8x1xf32>
    %58 = tpu.reciprocal %57 {approx = true} : vector<8x1xf32> -> vector<8x1xf32>
    %59 = vector.broadcast %58 : vector<8x1xf32> to vector<8x8xf32>
    %60 = arith.mulf %55, %59 : vector<8x8xf32>
    %cst_23 = arith.constant dense<0.000000e+00> : vector<8x8xf32>
    %61 = tpu.matmul %60, %47, %cst_23 {dimension_numbers = #tpu.dot_dimension_numbers<[1], [0], [0], [1], [0, 0, 1, 1], [], []>} : vector<8x8xf32>, vector<8x8xf32>, vector<8x8xf32> -> vector<8x8xf32>
    %62 = vector.extract_strided_slice %6 {offsets = [0, 24], sizes = [8, 8], strides = [1, 1]} : vector<8x96xf32> to vector<8x8xf32>
    %63 = vector.extract_strided_slice %6 {offsets = [0, 56], sizes = [8, 8], strides = [1, 1]} : vector<8x96xf32> to vector<8x8xf32>
    %64 = vector.extract_strided_slice %7 {offsets = [0, 24], sizes = [8, 8], strides = [1, 1]} : vector<8x32xf32> to vector<8x8xf32>
    %cst_24 = arith.constant dense<0.000000e+00> : vector<8x8xf32>
    %65 = tpu.matmul %62, %63, %cst_24 {dimension_numbers = #tpu.dot_dimension_numbers<[1], [1], [0], [0], [0, 0, 1, 0], [], []>} : vector<8x8xf32>, vector<8x8xf32>, vector<8x8xf32> -> vector<8x8xf32>
    %cst_25 = arith.constant 0.353553385 : f32
    %66 = vector.broadcast %cst_25 : f32 to vector<8x8xf32>
    %67 = arith.mulf %65, %66 : vector<8x8xf32>
    %cst_26 = arith.constant dense<0xFF800000> : vector<8xf32>
    %68 = vector.multi_reduction <maximumf>, %67, %cst_26 [1] : vector<8x8xf32> to vector<8xf32>
    %69 = vector.shape_cast %68 : vector<8xf32> to vector<8x1xf32>
    %70 = vector.broadcast %69 : vector<8x1xf32> to vector<8x8xf32>
    %71 = arith.subf %67, %70 : vector<8x8xf32>
    %72 = math.exp %71 : vector<8x8xf32>
    %cst_27 = arith.constant dense<0.000000e+00> : vector<8xf32>
    %73 = vector.multi_reduction <add>, %72, %cst_27 [1] : vector<8x8xf32> to vector<8xf32>
    %74 = vector.shape_cast %73 : vector<8xf32> to vector<8x1xf32>
    %75 = tpu.reciprocal %74 {approx = true} : vector<8x1xf32> -> vector<8x1xf32>
    %76 = vector.broadcast %75 : vector<8x1xf32> to vector<8x8xf32>
    %77 = arith.mulf %72, %76 : vector<8x8xf32>
    %cst_28 = arith.constant dense<0.000000e+00> : vector<8x8xf32>
    %78 = tpu.matmul %77, %64, %cst_28 {dimension_numbers = #tpu.dot_dimension_numbers<[1], [0], [0], [1], [0, 0, 1, 1], [], []>} : vector<8x8xf32>, vector<8x8xf32>, vector<8x8xf32> -> vector<8x8xf32>
    %79 = tpu.concatenate %27, %44, %61, %78 in 1 : vector<8x8xf32>, vector<8x8xf32>, vector<8x8xf32>, vector<8x8xf32> -> vector<8x32xf32>
    %c0_29 = arith.constant 0 : index
    %c0_30 = arith.constant 0 : index
    %c0_31 = arith.constant 0 : index
    %80 = vector.load %arg5[%c0_29, %c0_30, %c0_31] : memref<1x8x32xf32, #tpu.memory_space<vmem>>, vector<1x8x32xf32>
    %81 = vector.shape_cast %80 : vector<1x8x32xf32> to vector<8x32xf32>
    %82 = vector.shape_cast %79 : vector<8x32xf32> to vector<1x8x32xf32>
    tpu.vector_store %arg5[%c0_29, %c0_30, %c0_31], %82 {strides = array<i32>} : memref<1x8x32xf32, #tpu.memory_space<vmem>>, vector<1x8x32xf32>,
    return
  }
  func.func @transform_0(%arg0: i32) -> (i32, i32, i32) {
    %c0_i32 = arith.constant 0 : i32
    %c0_i32_0 = arith.constant 0 : i32
    %c0_i32_1 = arith.constant 0 : i32
    return %arg0, %c0_i32, %c0_i32_0 : i32, i32, i32
  }
  func.func @transform_1(%arg0: i32) -> (i32, i32) {
    %c0_i32 = arith.constant 0 : i32
    %c0_i32_0 = arith.constant 0 : i32
    %c0_i32_1 = arith.constant 0 : i32
    return %c0_i32, %c0_i32_0 : i32, i32
  }
  func.func @transform_2(%arg0: i32) -> (i32, i32) {
    %c0_i32 = arith.constant 0 : i32
    %c0_i32_0 = arith.constant 0 : i32
    %c0_i32_1 = arith.constant 0 : i32
    return %c0_i32, %c0_i32_0 : i32, i32
  }
  func.func @transform_3(%arg0: i32) -> (i32, i32, i32) {
    %c0_i32 = arith.constant 0 : i32
    %c0_i32_0 = arith.constant 0 : i32
    %c0_i32_1 = arith.constant 0 : i32
    return %arg0, %c0_i32, %c0_i32_0 : i32, i32, i32
  }
  func.func @transform_4(%arg0: i32) -> (i32, i32, i32) {
    %c0_i32 = arith.constant 0 : i32
    %c0_i32_0 = arith.constant 0 : i32
    %c0_i32_1 = arith.constant 0 : i32
    return %arg0, %c0_i32, %c0_i32_0 : i32, i32, i32
  }
}

</mosaic_0001>

<llo_original>
// kernel: tpu_custom_call.1
$region0: #{tpu_custom_call.1}
  #allocation0 [shape = 'u32[]', space=smem, size = 0x4, offset = 0x4, fixed_abs, tag = 'smem constant byte address 0x4 - core index']
  #allocation1 [shape = 'u32[144,128]{1,0:T(1,128)}', space=vmem, size = 0x12000, scoped, tag = 'internal scratch']
  %s0 = inlined_call_operand.hbm [shape: f32[2,8,32], index: 0, kind: input, shape index: {}]
  %s1 = inlined_call_operand.hbm [shape: f32[32,96], index: 1, kind: input, shape index: {}]
  %s2 = inlined_call_operand.vmem [shape: f32[1,96], index: 2, kind: input, shape index: {}]
  %s3 = inlined_call_operand.hbm [shape: f32[2,8,32], index: 3, kind: output, shape index: {0}]
  %s4 = inlined_call_operand.hbm [shape: f32[2,8,32], index: 4, kind: output, shape index: {1}]
  %5 = xla_tuple %s3, %s4
  %s6 = sld [smem:[#allocation0]]
  $region61: #{tpu_custom_call.1} parent=0
    _
  %s8 = ssub.s32 1, %s6
  %s9 = scalar_select 0, %s8, %s6
  $region1: #{tpu_custom_call.1} parent=0
    #allocation2 [shape = 'u8[8192]{0}', space=vmem, size = 0x2000, scoped, tag = 'input window, operand 0']
    #allocation3 [shape = 's32[2]{0}', space=sflag, size = 0x8, scoped, tag = 'scoped memory for tpu_custom_call.1']
    #allocation4 [shape = 's32[2]{0}', space=sflag, size = 0x8, scoped, tag = 'scoped memory for tpu_custom_call.1']
    #allocation5 [shape = 'u8[16384]{0}', space=vmem, size = 0x4000, scoped, tag = 'input window, operand 1, single buffered']
    #allocation6 [shape = 's32[1]{0}', space=sflag, size = 0x4, scoped, tag = 'scoped memory for tpu_custom_call.1']
    #allocation7 [shape = 'u8[8192]{0}', space=vmem, size = 0x2000, scoped, tag = 'output window, operand 0']
    #allocation8 [shape = 'u8[8192]{0}', space=vmem, size = 0x2000, scoped, tag = 'output window, operand 1']
    #allocation9 [shape = 's32[2]{0}', space=sflag, size = 0x8, scoped, tag = 'scoped memory for tpu_custom_call.1']
    %10 = vsyncpa [#allocation3], 0
    %s11 = scalar_lea.sflag [#allocation3], 1
    %12 = vsyncpa %s11, 0
    %13 = vsyncpa [#allocation6], 0
    %14 = vsyncpa [#allocation4], 0
    %s15 = scalar_lea.sflag [#allocation4], 1
    %16 = vsyncpa %s15, 0
    %17 = vsyncpa [#allocation9], 0
    %s18 = scalar_lea.sflag [#allocation9], 1
    %19 = vsyncpa %s18, 0
    loop: start=0, step=1, limit=4
    $region2: #{tpu_custom_call.1} parent=1 // loop_pre_header
      _
    $region3: #{tpu_custom_call.1} parent=1 // loop_header
      %s21 = sphi 0, %s25
      %p22 = scmp.ge.s32.totalorder %s21, 4
      %s31 = sphi 0, %s33
      %s34 = sphi 0, %s31
      %s35 = sphi 0, %s34
      %s51 = sphi 0, %s35
      %s55 = sphi 0, %s55
      %s57 = sphi 0, %s55
      %s58 = sphi 0, %s57
      %s72 = sphi 0, %s58
      %s76 = sphi 0, %s76
      %s78 = sphi 0, %s76
      %s79 = sphi 0, %s78
      %s93 = sphi 0, %s79
      %s99 = sphi 0, %s101
      %s102 = sphi 0, %s99
      %s103 = sphi 0, %s102
      %s119 = sphi 0, %s103
      %s125 = sphi 0, %s127
      %s128 = sphi 0, %s125
      %s129 = sphi 0, %s128
      %s145 = sphi 0, %s129
    $region4: #{tpu_custom_call.1} parent=1 // loop_header_branch
      %24 = sbr.rel (%p22) target = $region8
    $region5: #{tpu_custom_call.1} parent=1 // loop_body
      %s26 = ssub.s32 %s21, 1
      %s27 = ssub.s32 %s21, 2
      %s28 = sadd.s32 %s21, 1
      %s29 = ssub.s32 %s21, %s28
      %p30 = scmp.eq.s32.totalorder %s29, 0
      %s32 = sadd.s32 %s31, 1
      %s33 = scalar_select %p30, %s31, %s32
      %p36 = pneg %p30
      %p37 = scmp.eq.s32.totalorder %s21, 1
      %p38 = por %p36, %p37
      %p39 = scmp.ne.s32.totalorder %s31, %s34
      %p40 = scmp.eq.s32.totalorder %s21, 0
      %p41 = por %p39, %p40
      %p42 = scmp.ne.s32.totalorder %s31, %s34
      %p43 = scmp.eq.s32.totalorder %s26, 1
      %p44 = por %p42, %p43
      %p45 = scmp.ne.s32.totalorder %s34, %s35
      %p46 = scmp.eq.s32.totalorder %s26, 0
      %p47 = por %p45, %p46
      %p48 = scmp.ne.s32.totalorder %s34, %s35
      %p49 = scmp.eq.s32.totalorder %s27, 1
      %p50 = por %p48, %p49
      %p52 = scmp.ne.s32.totalorder %s35, %s51
      %p53 = scmp.eq.s32.totalorder %s27, 0
      %p54 = por %p52, %p53
      %s56 = sadd.s32 %s55, 1
      %p59 = scmp.eq.s32.totalorder %s21, 1
      %p60 = scmp.ne.s32.totalorder %s55, %s57
      %p61 = scmp.eq.s32.totalorder %s21, 0
      %p62 = por %p60, %p61
      %p63 = scmp.ne.s32.totalorder %s55, %s57
      %p64 = scmp.eq.s32.totalorder %s26, 1
      %p65 = por %p63, %p64
      %p66 = scmp.ne.s32.totalorder %s57, %s58
      %p67 = scmp.eq.s32.totalorder %s26, 0
      %p68 = por %p66, %p67
      %p69 = scmp.ne.s32.totalorder %s57, %s58
      %p70 = scmp.eq.s32.totalorder %s27, 1
      %p71 = por %p69, %p70
      %p73 = scmp.ne.s32.totalorder %s58, %s72
      %p74 = scmp.eq.s32.totalorder %s27, 0
      %p75 = por %p73, %p74
      %s77 = sadd.s32 %s76, 1
      %p80 = scmp.eq.s32.totalorder %s21, 1
      %p81 = scmp.ne.s32.totalorder %s76, %s78
      %p82 = scmp.eq.s32.totalorder %s21, 0
      %p83 = por %p81, %p82
      %p84 = scmp.ne.s32.totalorder %s76, %s78
      %p85 = scmp.eq.s32.totalorder %s26, 1
      %p86 = por %p84, %p85
      %p87 = scmp.ne.s32.totalorder %s78, %s79
      %p88 = scmp.eq.s32.totalorder %s26, 0
      %p89 = por %p87, %p88
      %p90 = scmp.ne.s32.totalorder %s78, %s79
      %p91 = scmp.eq.s32.totalorder %s27, 1
      %p92 = por %p90, %p91
      %p94 = scmp.ne.s32.totalorder %s79, %s93
      %p95 = scmp.eq.s32.totalorder %s27, 0
      %p96 = por %p94, %p95
      %s97 = ssub.s32 %s21, %s28
      %p98 = scmp.eq.s32.totalorder %s97, 0
      %s100 = sadd.s32 %s99, 1
      %s101 = scalar_select %p98, %s99, %s100
      %p104 = pneg %p98
      %p105 = scmp.eq.s32.totalorder %s21, 1
      %p106 = por %p104, %p105
      %p107 = scmp.ne.s32.totalorder %s99, %s102
      %p108 = scmp.eq.s32.totalorder %s21, 0
      %p109 = por %p107, %p108
      %p110 = scmp.ne.s32.totalorder %s99, %s102
      %p111 = scmp.eq.s32.totalorder %s26, 1
      %p112 = por %p110, %p111
      %p113 = scmp.ne.s32.totalorder %s102, %s103
      %p114 = scmp.eq.s32.totalorder %s26, 0
      %p115 = por %p113, %p114
      %p116 = scmp.ne.s32.totalorder %s102, %s103
      %p117 = scmp.eq.s32.totalorder %s27, 1
      %p118 = por %p116, %p117
      %p120 = scmp.ne.s32.totalorder %s103, %s119
      %p121 = scmp.eq.s32.totalorder %s27, 0
      %p122 = por %p120, %p121
      %s123 = ssub.s32 %s21, %s28
      %p124 = scmp.eq.s32.totalorder %s123, 0
      %s126 = sadd.s32 %s125, 1
      %s127 = scalar_select %p124, %s125, %s126
      %p130 = pneg %p124
      %p131 = scmp.eq.s32.totalorder %s21, 1
      %p132 = por %p130, %p131
      %p133 = scmp.ne.s32.totalorder %s125, %s128
      %p134 = scmp.eq.s32.totalorder %s21, 0
      %p135 = por %p133, %p134
      %p136 = scmp.ne.s32.totalorder %s125, %s128
      %p137 = scmp.eq.s32.totalorder %s26, 1
      %p138 = por %p136, %p137
      %p139 = scmp.ne.s32.totalorder %s128, %s129
      %p140 = scmp.eq.s32.totalorder %s26, 0
      %p141 = por %p139, %p140
      %p142 = scmp.ne.s32.totalorder %s128, %s129
      %p143 = scmp.eq.s32.totalorder %s27, 1
      %p144 = por %p142, %p143
      %p146 = scmp.ne.s32.totalorder %s129, %s145
      %p147 = scmp.eq.s32.totalorder %s27, 0
      %p148 = por %p146, %p147
      %p149 = scmp.le.s32.totalorder 1, %s21
      %p150 = scmp.lt.s32.totalorder %s21, 3
      %p151 = pnand %p149, %p150
      %p152 = pneg %p151
      // Predicated region
      $region9: #{tpu_custom_call.1} parent=5 // pred_check
        _
      $region10: #{tpu_custom_call.1} parent=5 // pred_check_branch
        %154 = sbr.rel (%p151) target = $region12
      $region11: #{tpu_custom_call.1} parent=5 // pred_region
        %s155 = ssub.s32 %s21, 1
        // Predicated region
        $region13: #{tpu_custom_call.1} parent=11 // pred_check
          %p156 = pneg %p68
        $region14: #{tpu_custom_call.1} parent=11 // pred_check_branch
          %158 = sbr.rel (%p156) target = $region16
        $region15: #{tpu_custom_call.1} parent=11 // pred_region
          %s160 = ssub.s32 512, 512
          %161 = vsyncadd [#allocation6], %s160
          %s162 = sshll.u32 [#allocation5], 4
          %s163 = int_to_ptr.vmem [resolvable:$true] %s162
          %168 = dma.hbm_to_vmem [thread:$0]  %s1, 512, %s163, [#allocation6], 128, 128, 8
        $region16: #{tpu_custom_call.1} parent=11 // pred_fallthru
          _
        // Predicated region
        $region17: #{tpu_custom_call.1} parent=11 // pred_check
          %p169 = pneg %p89
        $region18: #{tpu_custom_call.1} parent=11 // pred_check_branch
          %171 = sbr.rel (%p169) target = $region20
        $region19: #{tpu_custom_call.1} parent=11 // pred_region
          _
        $region20: #{tpu_custom_call.1} parent=11 // pred_fallthru
          _
      $region12: #{tpu_custom_call.1} parent=5 // pred_fallthru
        _
      %p172 = scmp.lt.s32.totalorder %s21, 2
      // Predicated region
      $region21: #{tpu_custom_call.1} parent=5 // pred_check
        %p173 = pneg %p172
      $region22: #{tpu_custom_call.1} parent=5 // pred_check_branch
        %175 = sbr.rel (%p173) target = $region24
      $region23: #{tpu_custom_call.1} parent=5 // pred_region
        // Predicated region
        $region25: #{tpu_custom_call.1} parent=23 // pred_check
          %p176 = pneg %p41
        $region26: #{tpu_custom_call.1} parent=23 // pred_check_branch
          %178 = sbr.rel (%p176) target = $region28
        $region27: #{tpu_custom_call.1} parent=23 // pred_region
          %s179 = sand.u32 %s31, 1
          %s180 = scalar_lea.sflag [#allocation3], %s179
          %s181 = sand.u32 %s31, 1
          %s182 = smul.addr %s181, 8
          %s183 = scalar_lea.vmem [#allocation2], %s182
          %s185 = ssub.s32 128, 128
          %186 = vsyncadd %s180, %s185
          %s187 = smul.addr %s21, 128
          %s188 = scalar_lea.hbm %s0, %s187
          %s190 = sshll.u32 %s183, 4
          %s191 = int_to_ptr.vmem [resolvable:$true] %s190
          %193 = dma.hbm_to_vmem [thread:$0]  %s188, 128, %s191, %s180
        $region28: #{tpu_custom_call.1} parent=23 // pred_fallthru
          _
      $region24: #{tpu_custom_call.1} parent=5 // pred_fallthru
        _
      %p194 = scmp.le.s32.totalorder 1, %s21
      %p195 = scmp.lt.s32.totalorder %s21, 3
      %p196 = pnand %p194, %p195
      %p197 = pneg %p196
      // Predicated region
      $region29: #{tpu_custom_call.1} parent=5 // pred_check
        _
      $region30: #{tpu_custom_call.1} parent=5 // pred_check_branch
        %199 = sbr.rel (%p196) target = $region32
      $region31: #{tpu_custom_call.1} parent=5 // pred_region
        %s200 = ssub.s32 %s21, 1
        %s201 = sand.u32 %s34, 1
        %s202 = scalar_lea.sflag [#allocation3], %s201
        %s203 = sand.u32 %s34, 1
        %s204 = smul.addr %s203, 8
        %s205 = scalar_lea.vmem [#allocation2], %s204
        // Predicated region
        $region33: #{tpu_custom_call.1} parent=31 // pred_check
          %p206 = pneg %p47
        $region34: #{tpu_custom_call.1} parent=31 // pred_check_branch
          %208 = sbr.rel (%p206) target = $region36
        $region35: #{tpu_custom_call.1} parent=31 // pred_region
          %209 = dma.done %s202, 128
        $region36: #{tpu_custom_call.1} parent=31 // pred_fallthru
          _
        // Predicated region
        $region37: #{tpu_custom_call.1} parent=31 // pred_check
          %p210 = pneg %p68
        $region38: #{tpu_custom_call.1} parent=31 // pred_check_branch
          %212 = sbr.rel (%p210) target = $region40
        $region39: #{tpu_custom_call.1} parent=31 // pred_region
          %213 = dma.done [#allocation6], 512
        $region40: #{tpu_custom_call.1} parent=31 // pred_fallthru
          _
        %s214 = sand.u32 %s34, 1
        %s215 = scalar_lea.sflag [#allocation3], %s214
        %s216 = sand.u32 %s34, 1
        %s217 = smul.addr %s216, 8
        %s218 = scalar_lea.vmem [#allocation2], %s217
        %p219 = pneg %p47
        %p220 = pneg %p44
        %p221 = pneg %p68
        %p222 = pneg %p65
        %p223 = pneg %p89
        %p224 = pneg %p86
        %p225 = pneg %p115
        %p226 = pneg %p112
        %s227 = sand.u32 %s102, 1
        %s228 = scalar_lea.sflag [#allocation4], %s227
        %s229 = sand.u32 %s102, 1
        %s230 = smul.addr %s229, 8
        %s231 = scalar_lea.vmem [#allocation7], %s230
        %p232 = pneg %p141
        %p233 = pneg %p138
        %s234 = sand.u32 %s128, 1
        %s235 = scalar_lea.sflag [#allocation9], %s234
        %s236 = sand.u32 %s128, 1
        %s237 = smul.addr %s236, 8
        %s238 = scalar_lea.vmem [#allocation8], %s237
        %v239 = vld [vmem:[%s205] sm:$0xff]
        %v240 = vld [vmem:[#allocation5] sm:$0xff]
        %v241 = vld [vmem:[#allocation5 + $0x8] sm:$0xff]
        %v242 = vld [vmem:[#allocation5 + $0x10] sm:$0xff]
        %v243 = vld [vmem:[#allocation5 + $0x18] sm:$0xff]
        %v244 = vld [vmem:[%s2] sm:$0x1]
        %v246 = vlaneseq
        %v247 = vshrl.u32 %v246, 7
        %v248 = vsub.s32 0, %v247
        %v249 = vrot.slane %v244, %v248
        %vm251 = vcmask 261120
        %v253 = vsel %vm251, %v239, 0
        %255 = vmatprep.subr.mxu0 0.0
        %256 = vmatpush1.msra.mxu0 %v240
        %257 = vmatprep.subr.mxu0 0.0
        %258 = vmatpush1.msra.mxu0 %v241
        %259 = vmatprep.subr.mxu0 0.0
        %260 = vmatpush1.msra.mxu0 %v242
        %261 = vmatprep.subr.mxu0 0.0
        %262 = vmatpush1.msra.mxu0 %v243
        %263 = vmatprep.subr.mxu0 0.0
        %264 = vmatpush1.msra.mxu0 0.0
        %265 = vmatprep.subr.mxu0 0.0
        %266 = vmatpush1.msra.mxu0 0.0
        %267 = vmatprep.subr.mxu0 0.0
        %268 = vmatpush1.msra.mxu0 0.0
        %269 = vmatprep.subr.mxu0 0.0
        %270 = vmatpush1.msra.mxu0 0.0
        %271 = vmatprep.subr.mxu0 0.0
        %272 = vmatpush1.msra.mxu0 0.0
        %273 = vmatprep.subr.mxu0 0.0
        %274 = vmatpush1.msra.mxu0 0.0
        %275 = vmatprep.subr.mxu0 0.0
        %276 = vmatpush1.msra.mxu0 0.0
        %277 = vmatprep.subr.mxu0 0.0
        %278 = vmatpush1.msra.mxu0 0.0
        %279 = vmatprep.subr.mxu0 0.0
        %280 = vmatpush1.msra.mxu0 0.0
        %281 = vmatprep.subr.mxu0 0.0
        %282 = vmatpush1.msra.mxu0 0.0
        %283 = vmatprep.subr.mxu0 0.0
        %284 = vmatpush1.msra.mxu0 0.0
        %285 = vmatprep.subr.mxu0 0.0
        %286 = vmatpush1.msra.mxu0 0.0
        %287 = vmatprep.subr.mxu0 0.0
        %288 = vmatpush1.msra.mxu0 0.0
        %289 = vmatprep.subr.mxu0 0.0
        %290 = vmatpush1.msra.mxu0 0.0
        %291 = vmatprep.subr.mxu0 0.0
        %292 = vmatpush1.msra.mxu0 0.0
        %293 = vmatprep.subr.mxu0 0.0
        %294 = vmatpush1.msra.mxu0 0.0
        %295 = vmatprep.subr.mxu0 0.0
        %296 = vmatpush1.msra.mxu0 0.0
        %297 = vmatprep.subr.mxu0 0.0
        %298 = vmatpush1.msra.mxu0 0.0
        %299 = vmatprep.subr.mxu0 0.0
        %300 = vmatpush1.msra.mxu0 0.0
        %301 = vmatprep.subr.mxu0 0.0
        %302 = vmatpush1.msra.mxu0 0.0
        %303 = vmatprep.subr.mxu0 0.0
        %304 = vmatpush1.msra.mxu0 0.0
        %305 = vmatprep.subr.mxu0 0.0
        %306 = vmatpush1.msra.mxu0 0.0
        %307 = vmatprep.subr.mxu0 0.0
        %308 = vmatpush1.msra.mxu0 0.0
        %309 = vmatprep.subr.mxu0 0.0
        %310 = vmatpush1.msra.mxu0 0.0
        %311 = vmatprep.subr.mxu0 0.0
        %312 = vmatpush1.msra.mxu0 0.0
        %313 = vmatprep.subr.mxu0 0.0
        %314 = vmatpush1.msra.mxu0 0.0
        %315 = vmatprep.subr.mxu0 0.0
        %316 = vmatpush1.msra.mxu0 0.0
        %317 = vmatprep.subr.mxu0 0.0
        %318 = vmatpush1.msra.mxu0 0.0
        %319 = vmatprep.mubr.f32.mxu0 0.0
        %320 = vmatmul.mubr.f32.gmra.mrb[0].mxu0 %v253
        %v321 = vpop.f32.mrb[0].mxu0
        %v322 = vadd.f32 %v249, %v321
        %v323 = vpop.f32.mrb[0].mxu0
        %324 = vdwg.mxu0
        %326 = vrot.lane.b32.xlu0 %v322, 64
        %v327 = vpop.permute.xlu0 %326
        %329 = vst.msk [vmem:[%s231] sm:$0xff] %vm251, %v327
        %330 = vrot.lane.b32.xlu0 %v322, 96
        %v331 = vpop.permute.xlu0 %330
        %vm332 = vcmask 64512
        %v333 = vsel %vm332, %v322, 0
        %v335 = vsel %vm332, %v331, 0
        %337 = vmatprep.subr.mxu0 0.0
        %338 = vmatpush1.xpose.msra.mxu0 %v335
        %339 = vmatprep.subr.mxu0 0.0
        %340 = vmatpush1.xpose.msra.mxu0 0.0
        %341 = vmatprep.subr.mxu0 0.0
        %342 = vmatpush1.xpose.msra.mxu0 0.0
        %343 = vmatprep.subr.mxu0 0.0
        %344 = vmatpush1.xpose.msra.mxu0 0.0
        %345 = vmatprep.subr.mxu0 0.0
        %346 = vmatpush1.xpose.msra.mxu0 0.0
        %347 = vmatprep.subr.mxu0 0.0
        %348 = vmatpush1.xpose.msra.mxu0 0.0
        %349 = vmatprep.subr.mxu0 0.0
        %350 = vmatpush1.xpose.msra.mxu0 0.0
        %351 = vmatprep.subr.mxu0 0.0
        %352 = vmatpush1.xpose.msra.mxu0 0.0
        %353 = vmatprep.subr.mxu0 0.0
        %354 = vmatpush1.xpose.msra.mxu0 0.0
        %355 = vmatprep.subr.mxu0 0.0
        %356 = vmatpush1.xpose.msra.mxu0 0.0
        %357 = vmatprep.subr.mxu0 0.0
        %358 = vmatpush1.xpose.msra.mxu0 0.0
        %359 = vmatprep.subr.mxu0 0.0
        %360 = vmatpush1.xpose.msra.mxu0 0.0
        %361 = vmatprep.subr.mxu0 0.0
        %362 = vmatpush1.xpose.msra.mxu0 0.0
        %363 = vmatprep.subr.mxu0 0.0
        %364 = vmatpush1.xpose.msra.mxu0 0.0
        %365 = vmatprep.subr.mxu0 0.0
        %366 = vmatpush1.xpose.msra.mxu0 0.0
        %367 = vmatprep.subr.mxu0 0.0
        %368 = vmatpush1.xpose.msra.mxu0 0.0
        %369 = vmatprep.subr.mxu0 0.0
        %370 = vmatpush1.xpose.msra.mxu0 0.0
        %371 = vmatprep.subr.mxu0 0.0
        %372 = vmatpush1.xpose.msra.mxu0 0.0
        %373 = vmatprep.subr.mxu0 0.0
        %374 = vmatpush1.xpose.msra.mxu0 0.0
        %375 = vmatprep.subr.mxu0 0.0
        %376 = vmatpush1.xpose.msra.mxu0 0.0
        %377 = vmatprep.subr.mxu0 0.0
        %378 = vmatpush1.xpose.msra.mxu0 0.0
        %379 = vmatprep.subr.mxu0 0.0
        %380 = vmatpush1.xpose.msra.mxu0 0.0
        %381 = vmatprep.subr.mxu0 0.0
        %382 = vmatpush1.xpose.msra.mxu0 0.0
        %383 = vmatprep.subr.mxu0 0.0
        %384 = vmatpush1.xpose.msra.mxu0 0.0
        %385 = vmatprep.subr.mxu0 0.0
        %386 = vmatpush1.xpose.msra.mxu0 0.0
        %387 = vmatprep.subr.mxu0 0.0
        %388 = vmatpush1.xpose.msra.mxu0 0.0
        %389 = vmatprep.subr.mxu0 0.0
        %390 = vmatpush1.xpose.msra.mxu0 0.0
        %391 = vmatprep.subr.mxu0 0.0
        %392 = vmatpush1.xpose.msra.mxu0 0.0
        %393 = vmatprep.subr.mxu0 0.0
        %394 = vmatpush1.xpose.msra.mxu0 0.0
        %395 = vmatprep.subr.mxu0 0.0
        %396 = vmatpush1.xpose.msra.mxu0 0.0
        %397 = vmatprep.subr.mxu0 0.0
        %398 = vmatpush1.xpose.msra.mxu0 0.0
        %399 = vmatprep.subr.mxu0 0.0
        %400 = vmatpush1.xpose.msra.mxu0 0.0
        %401 = vmatprep.mubr.f32.mxu0 0.0
        %402 = vmatmul.mubr.f32.gmra.mrb[0].mxu0 %v333
        %v403 = vpop.f32.mrb[0].mxu0
        %v404 = vadd.f32 0.0, %v403
        %v405 = vpop.f32.mrb[0].mxu0
        %406 = vdwg.mxu0
        %v407 = vmul.f32 %v404, 0.35355338
        %v408 = vsel %vm332, %v407, -inf
        %409 = vmax.xlane.f32.xlu0 %v408
        %v410 = vpop.xlane.xlu0 %409
        %v411 = vsub.f32 %v407, %v410
        %v412 = vmul.f32 %v411, 1.442695
        %v413 = vpow.pop %v412
        %v414 = vsel %vm332, %v413, 0.0
        %415 = vadd.xlane.f32.xlu0 %v414
        %v416 = vpop.xlane.xlu0 %415
        %v417 = vrcp.pop %v416
        %v418 = vmul.f32 %v413, %v417
        %v420 = vsel %vm332, %v418, 0
        %422 = vmatprep.subr.mxu0 0.0
        %423 = vmatpush1.msra.mxu0 %v327
        %424 = vmatprep.subr.mxu0 0.0
        %425 = vmatpush1.msra.mxu0 0.0
        %426 = vmatprep.subr.mxu0 0.0
        %427 = vmatpush1.msra.mxu0 0.0
        %428 = vmatprep.subr.mxu0 0.0
        %429 = vmatpush1.msra.mxu0 0.0
        %430 = vmatprep.subr.mxu0 0.0
        %431 = vmatpush1.msra.mxu0 0.0
        %432 = vmatprep.subr.mxu0 0.0
        %433 = vmatpush1.msra.mxu0 0.0
        %434 = vmatprep.subr.mxu0 0.0
        %435 = vmatpush1.msra.mxu0 0.0
        %436 = vmatprep.subr.mxu0 0.0
        %437 = vmatpush1.msra.mxu0 0.0
        %438 = vmatprep.subr.mxu0 0.0
        %439 = vmatpush1.msra.mxu0 0.0
        %440 = vmatprep.subr.mxu0 0.0
        %441 = vmatpush1.msra.mxu0 0.0
        %442 = vmatprep.subr.mxu0 0.0
        %443 = vmatpush1.msra.mxu0 0.0
        %444 = vmatprep.subr.mxu0 0.0
        %445 = vmatpush1.msra.mxu0 0.0
        %446 = vmatprep.subr.mxu0 0.0
        %447 = vmatpush1.msra.mxu0 0.0
        %448 = vmatprep.subr.mxu0 0.0
        %449 = vmatpush1.msra.mxu0 0.0
        %450 = vmatprep.subr.mxu0 0.0
        %451 = vmatpush1.msra.mxu0 0.0
        %452 = vmatprep.subr.mxu0 0.0
        %453 = vmatpush1.msra.mxu0 0.0
        %454 = vmatprep.subr.mxu0 0.0
        %455 = vmatpush1.msra.mxu0 0.0
        %456 = vmatprep.subr.mxu0 0.0
        %457 = vmatpush1.msra.mxu0 0.0
        %458 = vmatprep.subr.mxu0 0.0
        %459 = vmatpush1.msra.mxu0 0.0
        %460 = vmatprep.subr.mxu0 0.0
        %461 = vmatpush1.msra.mxu0 0.0
        %462 = vmatprep.subr.mxu0 0.0
        %463 = vmatpush1.msra.mxu0 0.0
        %464 = vmatprep.subr.mxu0 0.0
        %465 = vmatpush1.msra.mxu0 0.0
        %466 = vmatprep.subr.mxu0 0.0
        %467 = vmatpush1.msra.mxu0 0.0
        %468 = vmatprep.subr.mxu0 0.0
        %469 = vmatpush1.msra.mxu0 0.0
        %470 = vmatprep.subr.mxu0 0.0
        %471 = vmatpush1.msra.mxu0 0.0
        %472 = vmatprep.subr.mxu0 0.0
        %473 = vmatpush1.msra.mxu0 0.0
        %474 = vmatprep.subr.mxu0 0.0
        %475 = vmatpush1.msra.mxu0 0.0
        %476 = vmatprep.subr.mxu0 0.0
        %477 = vmatpush1.msra.mxu0 0.0
        %478 = vmatprep.subr.mxu0 0.0
        %479 = vmatpush1.msra.mxu0 0.0
        %480 = vmatprep.subr.mxu0 0.0
        %481 = vmatpush1.msra.mxu0 0.0
        %482 = vmatprep.subr.mxu0 0.0
        %483 = vmatpush1.msra.mxu0 0.0
        %484 = vmatprep.subr.mxu0 0.0
        %485 = vmatpush1.msra.mxu0 0.0
        %486 = vmatprep.mubr.f32.mxu0 0.0
        %487 = vmatmul.mubr.f32.gmra.mrb[0].mxu0 %v420
        %v488 = vpop.f32.mrb[0].mxu0
        %v489 = vadd.f32 0.0, %v488
        %v490 = vpop.f32.mrb[0].mxu0
        %491 = vdwg.mxu0
        %492 = vrot.lane.b32.xlu0 %v322, 120
        %v493 = vpop.permute.xlu0 %492
        %494 = vrot.lane.b32.xlu0 %v322, 88
        %v495 = vpop.permute.xlu0 %494
        %v496 = vsel %vm332, %v493, 0
        %v498 = vsel %vm332, %v495, 0
        %500 = vmatprep.subr.mxu0 0.0
        %501 = vmatpush1.xpose.msra.mxu0 %v498
        %502 = vmatprep.subr.mxu0 0.0
        %503 = vmatpush1.xpose.msra.mxu0 0.0
        %504 = vmatprep.subr.mxu0 0.0
        %505 = vmatpush1.xpose.msra.mxu0 0.0
        %506 = vmatprep.subr.mxu0 0.0
        %507 = vmatpush1.xpose.msra.mxu0 0.0
        %508 = vmatprep.subr.mxu0 0.0
        %509 = vmatpush1.xpose.msra.mxu0 0.0
        %510 = vmatprep.subr.mxu0 0.0
        %511 = vmatpush1.xpose.msra.mxu0 0.0
        %512 = vmatprep.subr.mxu0 0.0
        %513 = vmatpush1.xpose.msra.mxu0 0.0
        %514 = vmatprep.subr.mxu0 0.0
        %515 = vmatpush1.xpose.msra.mxu0 0.0
        %516 = vmatprep.subr.mxu0 0.0
        %517 = vmatpush1.xpose.msra.mxu0 0.0
        %518 = vmatprep.subr.mxu0 0.0
        %519 = vmatpush1.xpose.msra.mxu0 0.0
        %520 = vmatprep.subr.mxu0 0.0
        %521 = vmatpush1.xpose.msra.mxu0 0.0
        %522 = vmatprep.subr.mxu0 0.0
        %523 = vmatpush1.xpose.msra.mxu0 0.0
        %524 = vmatprep.subr.mxu0 0.0
        %525 = vmatpush1.xpose.msra.mxu0 0.0
        %526 = vmatprep.subr.mxu0 0.0
        %527 = vmatpush1.xpose.msra.mxu0 0.0
        %528 = vmatprep.subr.mxu0 0.0
        %529 = vmatpush1.xpose.msra.mxu0 0.0
        %530 = vmatprep.subr.mxu0 0.0
        %531 = vmatpush1.xpose.msra.mxu0 0.0
        %532 = vmatprep.subr.mxu0 0.0
        %533 = vmatpush1.xpose.msra.mxu0 0.0
        %534 = vmatprep.subr.mxu0 0.0
        %535 = vmatpush1.xpose.msra.mxu0 0.0
        %536 = vmatprep.subr.mxu0 0.0
        %537 = vmatpush1.xpose.msra.mxu0 0.0
        %538 = vmatprep.subr.mxu0 0.0
        %539 = vmatpush1.xpose.msra.mxu0 0.0
        %540 = vmatprep.subr.mxu0 0.0
        %541 = vmatpush1.xpose.msra.mxu0 0.0
        %542 = vmatprep.subr.mxu0 0.0
        %543 = vmatpush1.xpose.msra.mxu0 0.0
        %544 = vmatprep.subr.mxu0 0.0
        %545 = vmatpush1.xpose.msra.mxu0 0.0
        %546 = vmatprep.subr.mxu0 0.0
        %547 = vmatpush1.xpose.msra.mxu0 0.0
        %548 = vmatprep.subr.mxu0 0.0
        %549 = vmatpush1.xpose.msra.mxu0 0.0
        %550 = vmatprep.subr.mxu0 0.0
        %551 = vmatpush1.xpose.msra.mxu0 0.0
        %552 = vmatprep.subr.mxu0 0.0
        %553 = vmatpush1.xpose.msra.mxu0 0.0
        %554 = vmatprep.subr.mxu0 0.0
        %555 = vmatpush1.xpose.msra.mxu0 0.0
        %556 = vmatprep.subr.mxu0 0.0
        %557 = vmatpush1.xpose.msra.mxu0 0.0
        %558 = vmatprep.subr.mxu0 0.0
        %559 = vmatpush1.xpose.msra.mxu0 0.0
        %560 = vmatprep.subr.mxu0 0.0
        %561 = vmatpush1.xpose.msra.mxu0 0.0
        %562 = vmatprep.subr.mxu0 0.0
        %563 = vmatpush1.xpose.msra.mxu0 0.0
        %564 = vmatprep.mubr.f32.mxu0 0.0
        %565 = vmatmul.mubr.f32.gmra.mrb[0].mxu0 %v496
        %v566 = vpop.f32.mrb[0].mxu0
        %v567 = vadd.f32 0.0, %v566
        %v568 = vpop.f32.mrb[0].mxu0
        %569 = vdwg.mxu0
        %v570 = vmul.f32 %v567, 0.35355338
        %v571 = vsel %vm332, %v570, -inf
        %572 = vmax.xlane.f32.xlu0 %v571
        %v573 = vpop.xlane.xlu0 %572
        %v574 = vsub.f32 %v570, %v573
        %v575 = vmul.f32 %v574, 1.442695
        %v576 = vpow.pop %v575
        %v577 = vsel %vm332, %v576, 0.0
        %578 = vadd.xlane.f32.xlu0 %v577
        %v579 = vpop.xlane.xlu0 %578
        %v580 = vrcp.pop %v579
        %v581 = vmul.f32 %v576, %v580
        %582 = vrot.lane.b32.xlu0 %v322, 56
        %v583 = vpop.permute.xlu0 %582
        %v586 = vsel %vm332, %v581, 0
        %588 = vmatprep.subr.mxu0 0.0
        %589 = vmatpush1.msra.mxu0 %v583
        %590 = vmatprep.subr.mxu0 0.0
        %591 = vmatpush1.msra.mxu0 0.0
        %592 = vmatprep.subr.mxu0 0.0
        %593 = vmatpush1.msra.mxu0 0.0
        %594 = vmatprep.subr.mxu0 0.0
        %595 = vmatpush1.msra.mxu0 0.0
        %596 = vmatprep.subr.mxu0 0.0
        %597 = vmatpush1.msra.mxu0 0.0
        %598 = vmatprep.subr.mxu0 0.0
        %599 = vmatpush1.msra.mxu0 0.0
        %600 = vmatprep.subr.mxu0 0.0
        %601 = vmatpush1.msra.mxu0 0.0
        %602 = vmatprep.subr.mxu0 0.0
        %603 = vmatpush1.msra.mxu0 0.0
        %604 = vmatprep.subr.mxu0 0.0
        %605 = vmatpush1.msra.mxu0 0.0
        %606 = vmatprep.subr.mxu0 0.0
        %607 = vmatpush1.msra.mxu0 0.0
        %608 = vmatprep.subr.mxu0 0.0
        %609 = vmatpush1.msra.mxu0 0.0
        %610 = vmatprep.subr.mxu0 0.0
        %611 = vmatpush1.msra.mxu0 0.0
        %612 = vmatprep.subr.mxu0 0.0
        %613 = vmatpush1.msra.mxu0 0.0
        %614 = vmatprep.subr.mxu0 0.0
        %615 = vmatpush1.msra.mxu0 0.0
        %616 = vmatprep.subr.mxu0 0.0
        %617 = vmatpush1.msra.mxu0 0.0
        %618 = vmatprep.subr.mxu0 0.0
        %619 = vmatpush1.msra.mxu0 0.0
        %620 = vmatprep.subr.mxu0 0.0
        %621 = vmatpush1.msra.mxu0 0.0
        %622 = vmatprep.subr.mxu0 0.0
        %623 = vmatpush1.msra.mxu0 0.0
        %624 = vmatprep.subr.mxu0 0.0
        %625 = vmatpush1.msra.mxu0 0.0
        %626 = vmatprep.subr.mxu0 0.0
        %627 = vmatpush1.msra.mxu0 0.0
        %628 = vmatprep.subr.mxu0 0.0
        %629 = vmatpush1.msra.mxu0 0.0
        %630 = vmatprep.subr.mxu0 0.0
        %631 = vmatpush1.msra.mxu0 0.0
        %632 = vmatprep.subr.mxu0 0.0
        %633 = vmatpush1.msra.mxu0 0.0
        %634 = vmatprep.subr.mxu0 0.0
        %635 = vmatpush1.msra.mxu0 0.0
        %636 = vmatprep.subr.mxu0 0.0
        %637 = vmatpush1.msra.mxu0 0.0
        %638 = vmatprep.subr.mxu0 0.0
        %639 = vmatpush1.msra.mxu0 0.0
        %640 = vmatprep.subr.mxu0 0.0
        %641 = vmatpush1.msra.mxu0 0.0
        %642 = vmatprep.subr.mxu0 0.0
        %643 = vmatpush1.msra.mxu0 0.0
        %644 = vmatprep.subr.mxu0 0.0
        %645 = vmatpush1.msra.mxu0 0.0
        %646 = vmatprep.subr.mxu0 0.0
        %647 = vmatpush1.msra.mxu0 0.0
        %648 = vmatprep.subr.mxu0 0.0
        %649 = vmatpush1.msra.mxu0 0.0
        %650 = vmatprep.subr.mxu0 0.0
        %651 = vmatpush1.msra.mxu0 0.0
        %652 = vmatprep.mubr.f32.mxu0 0.0
        %653 = vmatmul.mubr.f32.gmra.mrb[0].mxu0 %v586
        %v654 = vpop.f32.mrb[0].mxu0
        %v655 = vadd.f32 0.0, %v654
        %v656 = vpop.f32.mrb[0].mxu0
        %657 = vdwg.mxu0
        %658 = vrot.lane.b32.xlu0 %v322, 112
        %v659 = vpop.permute.xlu0 %658
        %660 = vrot.lane.b32.xlu0 %v322, 80
        %v661 = vpop.permute.xlu0 %660
        %v662 = vsel %vm332, %v659, 0
        %v664 = vsel %vm332, %v661, 0
        %666 = vmatprep.subr.mxu0 0.0
        %667 = vmatpush1.xpose.msra.mxu0 %v664
        %668 = vmatprep.subr.mxu0 0.0
        %669 = vmatpush1.xpose.msra.mxu0 0.0
        %670 = vmatprep.subr.mxu0 0.0
        %671 = vmatpush1.xpose.msra.mxu0 0.0
        %672 = vmatprep.subr.mxu0 0.0
        %673 = vmatpush1.xpose.msra.mxu0 0.0
        %674 = vmatprep.subr.mxu0 0.0
        %675 = vmatpush1.xpose.msra.mxu0 0.0
        %676 = vmatprep.subr.mxu0 0.0
        %677 = vmatpush1.xpose.msra.mxu0 0.0
        %678 = vmatprep.subr.mxu0 0.0
        %679 = vmatpush1.xpose.msra.mxu0 0.0
        %680 = vmatprep.subr.mxu0 0.0
        %681 = vmatpush1.xpose.msra.mxu0 0.0
        %682 = vmatprep.subr.mxu0 0.0
        %683 = vmatpush1.xpose.msra.mxu0 0.0
        %684 = vmatprep.subr.mxu0 0.0
        %685 = vmatpush1.xpose.msra.mxu0 0.0
        %686 = vmatprep.subr.mxu0 0.0
        %687 = vmatpush1.xpose.msra.mxu0 0.0
        %688 = vmatprep.subr.mxu0 0.0
        %689 = vmatpush1.xpose.msra.mxu0 0.0
        %690 = vmatprep.subr.mxu0 0.0
        %691 = vmatpush1.xpose.msra.mxu0 0.0
        %692 = vmatprep.subr.mxu0 0.0
        %693 = vmatpush1.xpose.msra.mxu0 0.0
        %694 = vmatprep.subr.mxu0 0.0
        %695 = vmatpush1.xpose.msra.mxu0 0.0
        %696 = vmatprep.subr.mxu0 0.0
        %697 = vmatpush1.xpose.msra.mxu0 0.0
        %698 = vmatprep.subr.mxu0 0.0
        %699 = vmatpush1.xpose.msra.mxu0 0.0
        %700 = vmatprep.subr.mxu0 0.0
        %701 = vmatpush1.xpose.msra.mxu0 0.0
        %702 = vmatprep.subr.mxu0 0.0
        %703 = vmatpush1.xpose.msra.mxu0 0.0
        %704 = vmatprep.subr.mxu0 0.0
        %705 = vmatpush1.xpose.msra.mxu0 0.0
        %706 = vmatprep.subr.mxu0 0.0
        %707 = vmatpush1.xpose.msra.mxu0 0.0
        %708 = vmatprep.subr.mxu0 0.0
        %709 = vmatpush1.xpose.msra.mxu0 0.0
        %710 = vmatprep.subr.mxu0 0.0
        %711 = vmatpush1.xpose.msra.mxu0 0.0
        %712 = vmatprep.subr.mxu0 0.0
        %713 = vmatpush1.xpose.msra.mxu0 0.0
        %714 = vmatprep.subr.mxu0 0.0
        %715 = vmatpush1.xpose.msra.mxu0 0.0
        %716 = vmatprep.subr.mxu0 0.0
        %717 = vmatpush1.xpose.msra.mxu0 0.0
        %718 = vmatprep.subr.mxu0 0.0
        %719 = vmatpush1.xpose.msra.mxu0 0.0
        %720 = vmatprep.subr.mxu0 0.0
        %721 = vmatpush1.xpose.msra.mxu0 0.0
        %722 = vmatprep.subr.mxu0 0.0
        %723 = vmatpush1.xpose.msra.mxu0 0.0
        %724 = vmatprep.subr.mxu0 0.0
        %725 = vmatpush1.xpose.msra.mxu0 0.0
        %726 = vmatprep.subr.mxu0 0.0
        %727 = vmatpush1.xpose.msra.mxu0 0.0
        %728 = vmatprep.subr.mxu0 0.0
        %729 = vmatpush1.xpose.msra.mxu0 0.0
        %730 = vmatprep.mubr.f32.mxu0 0.0
        %731 = vmatmul.mubr.f32.gmra.mrb[0].mxu0 %v662
        %v732 = vpop.f32.mrb[0].mxu0
        %v733 = vadd.f32 0.0, %v732
        %v734 = vpop.f32.mrb[0].mxu0
        %735 = vdwg.mxu0
        %v736 = vmul.f32 %v733, 0.35355338
        %v737 = vsel %vm332, %v736, -inf
        %738 = vmax.xlane.f32.xlu0 %v737
        %v739 = vpop.xlane.xlu0 %738
        %v740 = vsub.f32 %v736, %v739
        %v741 = vmul.f32 %v740, 1.442695
        %v742 = vpow.pop %v741
        %v743 = vsel %vm332, %v742, 0.0
        %744 = vadd.xlane.f32.xlu0 %v743
        %v745 = vpop.xlane.xlu0 %744
        %v746 = vrcp.pop %v745
        %v747 = vmul.f32 %v742, %v746
        %748 = vrot.lane.b32.xlu0 %v322, 48
        %v749 = vpop.permute.xlu0 %748
        %v752 = vsel %vm332, %v747, 0
        %754 = vmatprep.subr.mxu0 0.0
        %755 = vmatpush1.msra.mxu0 %v749
        %756 = vmatprep.subr.mxu0 0.0
        %757 = vmatpush1.msra.mxu0 0.0
        %758 = vmatprep.subr.mxu0 0.0
        %759 = vmatpush1.msra.mxu0 0.0
        %760 = vmatprep.subr.mxu0 0.0
        %761 = vmatpush1.msra.mxu0 0.0
        %762 = vmatprep.subr.mxu0 0.0
        %763 = vmatpush1.msra.mxu0 0.0
        %764 = vmatprep.subr.mxu0 0.0
        %765 = vmatpush1.msra.mxu0 0.0
        %766 = vmatprep.subr.mxu0 0.0
        %767 = vmatpush1.msra.mxu0 0.0
        %768 = vmatprep.subr.mxu0 0.0
        %769 = vmatpush1.msra.mxu0 0.0
        %770 = vmatprep.subr.mxu0 0.0
        %771 = vmatpush1.msra.mxu0 0.0
        %772 = vmatprep.subr.mxu0 0.0
        %773 = vmatpush1.msra.mxu0 0.0
        %774 = vmatprep.subr.mxu0 0.0
        %775 = vmatpush1.msra.mxu0 0.0
        %776 = vmatprep.subr.mxu0 0.0
        %777 = vmatpush1.msra.mxu0 0.0
        %778 = vmatprep.subr.mxu0 0.0
        %779 = vmatpush1.msra.mxu0 0.0
        %780 = vmatprep.subr.mxu0 0.0
        %781 = vmatpush1.msra.mxu0 0.0
        %782 = vmatprep.subr.mxu0 0.0
        %783 = vmatpush1.msra.mxu0 0.0
        %784 = vmatprep.subr.mxu0 0.0
        %785 = vmatpush1.msra.mxu0 0.0
        %786 = vmatprep.subr.mxu0 0.0
        %787 = vmatpush1.msra.mxu0 0.0
        %788 = vmatprep.subr.mxu0 0.0
        %789 = vmatpush1.msra.mxu0 0.0
        %790 = vmatprep.subr.mxu0 0.0
        %791 = vmatpush1.msra.mxu0 0.0
        %792 = vmatprep.subr.mxu0 0.0
        %793 = vmatpush1.msra.mxu0 0.0
        %794 = vmatprep.subr.mxu0 0.0
        %795 = vmatpush1.msra.mxu0 0.0
        %796 = vmatprep.subr.mxu0 0.0
        %797 = vmatpush1.msra.mxu0 0.0
        %798 = vmatprep.subr.mxu0 0.0
        %799 = vmatpush1.msra.mxu0 0.0
        %800 = vmatprep.subr.mxu0 0.0
        %801 = vmatpush1.msra.mxu0 0.0
        %802 = vmatprep.subr.mxu0 0.0
        %803 = vmatpush1.msra.mxu0 0.0
        %804 = vmatprep.subr.mxu0 0.0
        %805 = vmatpush1.msra.mxu0 0.0
        %806 = vmatprep.subr.mxu0 0.0
        %807 = vmatpush1.msra.mxu0 0.0
        %808 = vmatprep.subr.mxu0 0.0
        %809 = vmatpush1.msra.mxu0 0.0
        %810 = vmatprep.subr.mxu0 0.0
        %811 = vmatpush1.msra.mxu0 0.0
        %812 = vmatprep.subr.mxu0 0.0
        %813 = vmatpush1.msra.mxu0 0.0
        %814 = vmatprep.subr.mxu0 0.0
        %815 = vmatpush1.msra.mxu0 0.0
        %816 = vmatprep.subr.mxu0 0.0
        %817 = vmatpush1.msra.mxu0 0.0
        %818 = vmatprep.mubr.f32.mxu0 0.0
        %819 = vmatmul.mubr.f32.gmra.mrb[0].mxu0 %v752
        %v820 = vpop.f32.mrb[0].mxu0
        %v821 = vadd.f32 0.0, %v820
        %v822 = vpop.f32.mrb[0].mxu0
        %823 = vdwg.mxu0
        %824 = vrot.lane.b32.xlu0 %v322, 104
        %v825 = vpop.permute.xlu0 %824
        %826 = vrot.lane.b32.xlu0 %v322, 72
        %v827 = vpop.permute.xlu0 %826
        %v828 = vsel %vm332, %v825, 0
        %v830 = vsel %vm332, %v827, 0
        %832 = vmatprep.subr.mxu0 0.0
        %833 = vmatpush1.xpose.msra.mxu0 %v830
        %834 = vmatprep.subr.mxu0 0.0
        %835 = vmatpush1.xpose.msra.mxu0 0.0
        %836 = vmatprep.subr.mxu0 0.0
        %837 = vmatpush1.xpose.msra.mxu0 0.0
        %838 = vmatprep.subr.mxu0 0.0
        %839 = vmatpush1.xpose.msra.mxu0 0.0
        %840 = vmatprep.subr.mxu0 0.0
        %841 = vmatpush1.xpose.msra.mxu0 0.0
        %842 = vmatprep.subr.mxu0 0.0
        %843 = vmatpush1.xpose.msra.mxu0 0.0
        %844 = vmatprep.subr.mxu0 0.0
        %845 = vmatpush1.xpose.msra.mxu0 0.0
        %846 = vmatprep.subr.mxu0 0.0
        %847 = vmatpush1.xpose.msra.mxu0 0.0
        %848 = vmatprep.subr.mxu0 0.0
        %849 = vmatpush1.xpose.msra.mxu0 0.0
        %850 = vmatprep.subr.mxu0 0.0
        %851 = vmatpush1.xpose.msra.mxu0 0.0
        %852 = vmatprep.subr.mxu0 0.0
        %853 = vmatpush1.xpose.msra.mxu0 0.0
        %854 = vmatprep.subr.mxu0 0.0
        %855 = vmatpush1.xpose.msra.mxu0 0.0
        %856 = vmatprep.subr.mxu0 0.0
        %857 = vmatpush1.xpose.msra.mxu0 0.0
        %858 = vmatprep.subr.mxu0 0.0
        %859 = vmatpush1.xpose.msra.mxu0 0.0
        %860 = vmatprep.subr.mxu0 0.0
        %861 = vmatpush1.xpose.msra.mxu0 0.0
        %862 = vmatprep.subr.mxu0 0.0
        %863 = vmatpush1.xpose.msra.mxu0 0.0
        %864 = vmatprep.subr.mxu0 0.0
        %865 = vmatpush1.xpose.msra.mxu0 0.0
        %866 = vmatprep.subr.mxu0 0.0
        %867 = vmatpush1.xpose.msra.mxu0 0.0
        %868 = vmatprep.subr.mxu0 0.0
        %869 = vmatpush1.xpose.msra.mxu0 0.0
        %870 = vmatprep.subr.mxu0 0.0
        %871 = vmatpush1.xpose.msra.mxu0 0.0
        %872 = vmatprep.subr.mxu0 0.0
        %873 = vmatpush1.xpose.msra.mxu0 0.0
        %874 = vmatprep.subr.mxu0 0.0
        %875 = vmatpush1.xpose.msra.mxu0 0.0
        %876 = vmatprep.subr.mxu0 0.0
        %877 = vmatpush1.xpose.msra.mxu0 0.0
        %878 = vmatprep.subr.mxu0 0.0
        %879 = vmatpush1.xpose.msra.mxu0 0.0
        %880 = vmatprep.subr.mxu0 0.0
        %881 = vmatpush1.xpose.msra.mxu0 0.0
        %882 = vmatprep.subr.mxu0 0.0
        %883 = vmatpush1.xpose.msra.mxu0 0.0
        %884 = vmatprep.subr.mxu0 0.0
        %885 = vmatpush1.xpose.msra.mxu0 0.0
        %886 = vmatprep.subr.mxu0 0.0
        %887 = vmatpush1.xpose.msra.mxu0 0.0
        %888 = vmatprep.subr.mxu0 0.0
        %889 = vmatpush1.xpose.msra.mxu0 0.0
        %890 = vmatprep.subr.mxu0 0.0
        %891 = vmatpush1.xpose.msra.mxu0 0.0
        %892 = vmatprep.subr.mxu0 0.0
        %893 = vmatpush1.xpose.msra.mxu0 0.0
        %894 = vmatprep.subr.mxu0 0.0
        %895 = vmatpush1.xpose.msra.mxu0 0.0
        %896 = vmatprep.mubr.f32.mxu0 0.0
        %897 = vmatmul.mubr.f32.gmra.mrb[0].mxu0 %v828
        %v898 = vpop.f32.mrb[0].mxu0
        %v899 = vadd.f32 0.0, %v898
        %v900 = vpop.f32.mrb[0].mxu0
        %901 = vdwg.mxu0
        %v902 = vmul.f32 %v899, 0.35355338
        %v903 = vsel %vm332, %v902, -inf
        %904 = vmax.xlane.f32.xlu0 %v903
        %v905 = vpop.xlane.xlu0 %904
        %v906 = vsub.f32 %v902, %v905
        %v907 = vmul.f32 %v906, 1.442695
        %v908 = vpow.pop %v907
        %v909 = vsel %vm332, %v908, 0.0
        %910 = vadd.xlane.f32.xlu0 %v909
        %v911 = vpop.xlane.xlu0 %910
        %v912 = vrcp.pop %v911
        %v913 = vmul.f32 %v908, %v912
        %914 = vrot.lane.b32.xlu0 %v322, 40
        %v915 = vpop.permute.xlu0 %914
        %v918 = vsel %vm332, %v913, 0
        %920 = vmatprep.subr.mxu0 0.0
        %921 = vmatpush1.msra.mxu0 %v915
        %922 = vmatprep.subr.mxu0 0.0
        %923 = vmatpush1.msra.mxu0 0.0
        %924 = vmatprep.subr.mxu0 0.0
        %925 = vmatpush1.msra.mxu0 0.0
        %926 = vmatprep.subr.mxu0 0.0
        %927 = vmatpush1.msra.mxu0 0.0
        %928 = vmatprep.subr.mxu0 0.0
        %929 = vmatpush1.msra.mxu0 0.0
        %930 = vmatprep.subr.mxu0 0.0
        %931 = vmatpush1.msra.mxu0 0.0
        %932 = vmatprep.subr.mxu0 0.0
        %933 = vmatpush1.msra.mxu0 0.0
        %934 = vmatprep.subr.mxu0 0.0
        %935 = vmatpush1.msra.mxu0 0.0
        %936 = vmatprep.subr.mxu0 0.0
        %937 = vmatpush1.msra.mxu0 0.0
        %938 = vmatprep.subr.mxu0 0.0
        %939 = vmatpush1.msra.mxu0 0.0
        %940 = vmatprep.subr.mxu0 0.0
        %941 = vmatpush1.msra.mxu0 0.0
        %942 = vmatprep.subr.mxu0 0.0
        %943 = vmatpush1.msra.mxu0 0.0
        %944 = vmatprep.subr.mxu0 0.0
        %945 = vmatpush1.msra.mxu0 0.0
        %946 = vmatprep.subr.mxu0 0.0
        %947 = vmatpush1.msra.mxu0 0.0
        %948 = vmatprep.subr.mxu0 0.0
        %949 = vmatpush1.msra.mxu0 0.0
        %950 = vmatprep.subr.mxu0 0.0
        %951 = vmatpush1.msra.mxu0 0.0
        %952 = vmatprep.subr.mxu0 0.0
        %953 = vmatpush1.msra.mxu0 0.0
        %954 = vmatprep.subr.mxu0 0.0
        %955 = vmatpush1.msra.mxu0 0.0
        %956 = vmatprep.subr.mxu0 0.0
        %957 = vmatpush1.msra.mxu0 0.0
        %958 = vmatprep.subr.mxu0 0.0
        %959 = vmatpush1.msra.mxu0 0.0
        %960 = vmatprep.subr.mxu0 0.0
        %961 = vmatpush1.msra.mxu0 0.0
        %962 = vmatprep.subr.mxu0 0.0
        %963 = vmatpush1.msra.mxu0 0.0
        %964 = vmatprep.subr.mxu0 0.0
        %965 = vmatpush1.msra.mxu0 0.0
        %966 = vmatprep.subr.mxu0 0.0
        %967 = vmatpush1.msra.mxu0 0.0
        %968 = vmatprep.subr.mxu0 0.0
        %969 = vmatpush1.msra.mxu0 0.0
        %970 = vmatprep.subr.mxu0 0.0
        %971 = vmatpush1.msra.mxu0 0.0
        %972 = vmatprep.subr.mxu0 0.0
        %973 = vmatpush1.msra.mxu0 0.0
        %974 = vmatprep.subr.mxu0 0.0
        %975 = vmatpush1.msra.mxu0 0.0
        %976 = vmatprep.subr.mxu0 0.0
        %977 = vmatpush1.msra.mxu0 0.0
        %978 = vmatprep.subr.mxu0 0.0
        %979 = vmatpush1.msra.mxu0 0.0
        %980 = vmatprep.subr.mxu0 0.0
        %981 = vmatpush1.msra.mxu0 0.0
        %982 = vmatprep.subr.mxu0 0.0
        %983 = vmatpush1.msra.mxu0 0.0
        %984 = vmatprep.mubr.f32.mxu0 0.0
        %985 = vmatmul.mubr.f32.gmra.mrb[0].mxu0 %v918
        %v986 = vpop.f32.mrb[0].mxu0
        %v987 = vadd.f32 0.0, %v986
        %v988 = vpop.f32.mrb[0].mxu0
        %989 = vdwg.mxu0
        %991 = vrot.lane.b32.xlu0 %v655, 8
        %v992 = vpop.permute.xlu0 %991
        %995 = vrot.lane.b32.xlu0 %v821, 16
        %v996 = vpop.permute.xlu0 %995
        %999 = vrot.lane.b32.xlu0 %v987, 24
        %v1000 = vpop.permute.xlu0 %999
        %v1002 = vsel %vm332, %v489, %v992
        %vm1003 = vcmask 130048
        %v1004 = vsel %vm1003, %v1002, %v996
        %vm1005 = vcmask 195584
        %v1006 = vsel %vm1005, %v1004, %v1000
        %1007 = vst.msk [vmem:[%s238] sm:$0xff] %vm251, %v1006
        %s1008 = sand.u32 %s102, 1
        %s1009 = scalar_lea.sflag [#allocation4], %s1008
        %s1010 = sand.u32 %s102, 1
        %s1011 = smul.addr %s1010, 8
        %s1012 = scalar_lea.vmem [#allocation7], %s1011
        %s1013 = sand.u32 %s128, 1
        %s1014 = scalar_lea.sflag [#allocation9], %s1013
        %s1015 = sand.u32 %s128, 1
        %s1016 = smul.addr %s1015, 8
        %s1017 = scalar_lea.vmem [#allocation8], %s1016
        // Predicated region
        $region41: #{tpu_custom_call.1} parent=31 // pred_check
          %p1018 = pneg %p112
        $region42: #{tpu_custom_call.1} parent=31 // pred_check_branch
          %1020 = sbr.rel (%p1018) target = $region44
        $region43: #{tpu_custom_call.1} parent=31 // pred_region
          %s1022 = ssub.s32 128, 128
          %1023 = vsyncadd %s1009, %s1022
          %s1024 = smul.addr %s26, 128
          %s1025 = scalar_lea.hbm %s3, %s1024
          %s1027 = sshll.u32 %s1012, 4
          %s1028 = int_to_ptr.vmem [resolvable:$true] %s1027
          %1030 = dma.vmem_to_hbm [thread:$0]  %s1028, 128, %s1025, %s1009
        $region44: #{tpu_custom_call.1} parent=31 // pred_fallthru
          _
        // Predicated region
        $region45: #{tpu_custom_call.1} parent=31 // pred_check
          %p1031 = pneg %p138
        $region46: #{tpu_custom_call.1} parent=31 // pred_check_branch
          %1033 = sbr.rel (%p1031) target = $region48
        $region47: #{tpu_custom_call.1} parent=31 // pred_region
          %s1035 = ssub.s32 128, 128
          %1036 = vsyncadd %s1014, %s1035
          %s1037 = smul.addr %s26, 128
          %s1038 = scalar_lea.hbm %s4, %s1037
          %s1040 = sshll.u32 %s1017, 4
          %s1041 = int_to_ptr.vmem [resolvable:$true] %s1040
          %1043 = dma.vmem_to_hbm [thread:$0]  %s1041, 128, %s1038, %s1014
        $region48: #{tpu_custom_call.1} parent=31 // pred_fallthru
          _
      $region32: #{tpu_custom_call.1} parent=5 // pred_fallthru
        _
      %p1044 = scmp.le.s32.totalorder 2, %s21
      // Predicated region
      $region49: #{tpu_custom_call.1} parent=5 // pred_check
        %p1045 = pneg %p1044
      $region50: #{tpu_custom_call.1} parent=5 // pred_check_branch
        %1047 = sbr.rel (%p1045) target = $region52
      $region51: #{tpu_custom_call.1} parent=5 // pred_region
        %s1048 = ssub.s32 %s21, 2
        // Predicated region
        $region53: #{tpu_custom_call.1} parent=51 // pred_check
          %p1049 = pneg %p118
        $region54: #{tpu_custom_call.1} parent=51 // pred_check_branch
          %1051 = sbr.rel (%p1049) target = $region56
        $region55: #{tpu_custom_call.1} parent=51 // pred_region
          %s1052 = sand.u32 %s103, 1
          %s1053 = scalar_lea.sflag [#allocation4], %s1052
          %s1054 = sand.u32 %s103, 1
          %s1055 = smul.addr %s1054, 8
          %s1056 = scalar_lea.vmem [#allocation7], %s1055
          %1057 = dma.done %s1053, 128
        $region56: #{tpu_custom_call.1} parent=51 // pred_fallthru
          _
        // Predicated region
        $region57: #{tpu_custom_call.1} parent=51 // pred_check
          %p1058 = pneg %p144
        $region58: #{tpu_custom_call.1} parent=51 // pred_check_branch
          %1060 = sbr.rel (%p1058) target = $region60
        $region59: #{tpu_custom_call.1} parent=51 // pred_region
          %s1061 = sand.u32 %s129, 1
          %s1062 = scalar_lea.sflag [#allocation9], %s1061
          %s1063 = sand.u32 %s129, 1
          %s1064 = smul.addr %s1063, 8
          %s1065 = scalar_lea.vmem [#allocation8], %s1064
          %1066 = dma.done %s1062, 128
        $region60: #{tpu_custom_call.1} parent=51 // pred_fallthru
          _
      $region52: #{tpu_custom_call.1} parent=5 // pred_fallthru
        _
    $region6: #{tpu_custom_call.1} parent=1 // loop_footer
      %s25 = sadd.s32 1, %s21
    $region7: #{tpu_custom_call.1} parent=1 // loop_footer_branch
      %20 = sbr.rel target = $region3
    $region8: #{tpu_custom_call.1} parent=1 // loop_exit
      _
    %1067 = vsyncpa [#allocation3], 1
    %s1068 = scalar_lea.sflag [#allocation3], 1
    %1069 = vsyncpa %s1068, 1
    %1070 = vsyncpa [#allocation6], 1
    %1071 = vsyncpa [#allocation4], 1
    %s1072 = scalar_lea.sflag [#allocation4], 1
    %1073 = vsyncpa %s1072, 1
    %1074 = vsyncpa [#allocation9], 1
    %s1075 = scalar_lea.sflag [#allocation9], 1
    %1076 = vsyncpa %s1075, 1

</llo_original>
